<compile_context>
chip_gen: v7x
topology: tpu7x:2x2x1
jax: 0.10.0
libtpu: 0.0.40
codegen_flags: <defaults>
</compile_context>

<pallas_src>
import functools

import jax
import jax.numpy as jnp
from jax.experimental import pallas as pl
from jax.experimental.pallas import tpu as pltpu

LANE = 128  # TPU lane width: fused matmul width is padded to a multiple of this.


def _fused_output_kernel(x_ref, w_ref, b_ref, o_main_ref, o_mod_ref, acc_ref,
                         *, bs, t_frames, n_main, n_total, compute_dtype):
    # One wide MXU matmul covering rotFinal / ofsFinal / ofsModi.
    x = x_ref[...]
    if x.dtype != compute_dtype:
        x = x.astype(compute_dtype)           # in-kernel bf16 cast (no extra HBM pass)
    acc_ref[...] = (jnp.dot(x, w_ref[...], preferred_element_type=jnp.float32)
                    + b_ref[...])             # f32 accumulation + f32 bias

    # Fused permute(1,2,3,0): rows of acc are (frame-major, batch-minor).
    # For each batch element, gather its rows with a strided sublane load,
    # transpose 2-D (XLU), and store feature-major / frame-lane-dense blocks.
    # The per-joint [ofs|rot] interleave makes torch.cat a contiguous row range.
    for b in range(bs):                       # static unroll; bs is small
        idx = pl.ds(b, t_frames) if bs == 1 else pl.ds(b, t_frames, stride=bs)
        slab = acc_ref[idx, :]                # (t_frames, n_pad) f32
        slab_t = slab.T                       # (n_pad, t_frames)
        o_main_ref[b] = slab_t[:n_main].astype(o_main_ref.dtype)
        o_mod_ref[b] = slab_t[n_main:n_total].astype(o_mod_ref.dtype)


def _pick_t_frames(nframes, bs, k, x_bytes):
    """Frame-tile size: full when <=128 (block == full dim), else a multiple of
    128 sized against a ~4 MiB x-tile budget and >=2 grid steps (v7x megacore)."""
    if nframes <= 128:
        # TODO(synk): for nframes <= 128 the grid is a single step, so the second
        # v7x TensorCore idles; acceptable here (op is tiny / HBM-bound).
        return nframes
    by_vmem = max(1, (4 << 20) // max(1, bs * k * x_bytes * 128))
    by_split = max(1, nframes // 256)
    return 128 * max(1, min(by_vmem, by_split))


def fused_output_projection(x2d, w_fused, b_fused, *, nframes, bs, n_main,
                            n_total, compute_dtype, out_dtype):
    """x2d: (nframes*bs, K) rows ordered (frame-major, batch-minor).
    w_fused: (K, n_pad), b_fused: (1, n_pad) with n_pad % 128 == 0.
    Returns (bs, n_main, nframes) and (bs, n_total-n_main, nframes)."""
    M, K = x2d.shape
    assert M == nframes * bs
    Kw, n_pad = w_fused.shape
    assert Kw == K and n_pad % LANE == 0
    n_mod = n_total - n_main

    x_bytes = jnp.dtype(x2d.dtype).itemsize
    w_bytes = jnp.dtype(w_fused.dtype).itemsize
    o_bytes = jnp.dtype(out_dtype).itemsize

    t_frames = _pick_t_frames(nframes, bs, K, x_bytes)
    tm = t_frames * bs
    n_tiles = pl.cdiv(nframes, t_frames)   # ragged last tile: Pallas masks writes

    kernel = functools.partial(
        _fused_output_kernel, bs=bs, t_frames=t_frames,
        n_main=n_main, n_total=n_total, compute_dtype=compute_dtype)

    cost = pl.CostEstimate(
        flops=2 * M * K * n_pad,
        transcendentals=0,
        bytes_accessed=(M * K * x_bytes + K * n_pad * w_bytes + n_pad * 4
                        + M * n_total * o_bytes))

    out_main, out_mod = pl.pallas_call(
        kernel,
        out_shape=(jax.ShapeDtypeStruct((bs, n_main, nframes), out_dtype),
                   jax.ShapeDtypeStruct((bs, n_mod, nframes), out_dtype)),
        grid_spec=pltpu.PrefetchScalarGridSpec(
            num_scalar_prefetch=0,
            grid=(n_tiles,),
            in_specs=[
                pl.BlockSpec((tm, K), lambda i: (i, 0)),      # x tile (pipelined)
                # TODO(synk): add pipeline_mode=pl.Buffered(1) on the two resident
                # operands below (constant index_map) once single-buffering is
                # verified on the target Mosaic version -- saves one K*n_pad
                # buffer, which matters on v7x's 64 MiB VMEM.
                pl.BlockSpec((K, n_pad), lambda i: (0, 0)),   # fused weights (resident)
                pl.BlockSpec((1, n_pad), lambda i: (0, 0)),   # fused bias (resident)
            ],
            out_specs=[
                pl.BlockSpec((bs, n_main, t_frames), lambda i: (0, 0, i)),
                pl.BlockSpec((bs, n_mod, t_frames), lambda i: (0, 0, i)),
            ],
            scratch_shapes=[pltpu.VMEM((tm, n_pad), jnp.float32)],
        ),
        compiler_params=pltpu.CompilerParams(
            dimension_semantics=("parallel",),        # megacore sharding on v7x
            vmem_limit_bytes=32 * 1024 * 1024),
        cost_estimate=cost,
    )(x2d, w_fused, b_fused)
    return out_main, out_mod


class OutputProcessPallas:
    """JAX/Pallas equivalent of the PyTorch OutputProcess module."""

    def __init__(self, input_feats_rot, input_feats_ofs, latent_dim, njoints,
                 key, use_bf16=False):
        # use_bf16=False preserves the PyTorch f32 reference numerics; flip to
        # True in production (bf16 x/weights, f32 accumulation) per perf review.
        assert input_feats_rot % njoints == 0
        assert input_feats_ofs % njoints == 0
        self.input_feats_rot = input_feats_rot
        self.input_feats_ofs = input_feats_ofs
        self.latent_dim = latent_dim
        self.njoints = njoints
        self.rot_pj = input_feats_rot // njoints
        self.ofs_pj = input_feats_ofs // njoints
        self.use_bf16 = use_bf16

        k1, k2, k3, k4, k5, k6 = jax.random.split(key, 6)
        s = 1.0 / jnp.sqrt(latent_dim)
        # Per-layer weights stored transposed: (latent_dim, out_feats).
        self.w_rot = jax.random.uniform(k1, (latent_dim, input_feats_rot),
                                        jnp.float32, -s, s)
        self.b_rot = jax.random.uniform(k2, (1, input_feats_rot), jnp.float32, -s, s)
        self.w_ofs = jax.random.uniform(k3, (latent_dim, input_feats_ofs),
                                        jnp.float32, -s, s)
        self.b_ofs = jax.random.uniform(k4, (1, input_feats_ofs), jnp.float32, -s, s)
        self.w_mod = jax.random.uniform(k5, (latent_dim, input_feats_ofs),
                                        jnp.float32, -s, s)
        self.b_mod = jax.random.uniform(k6, (1, input_feats_ofs), jnp.float32, -s, s)

        # Fused, per-joint interleaved, lane-padded weight/bias (built once).
        fpj = self.ofs_pj + self.rot_pj
        w_main = jnp.concatenate(
            [self.w_ofs.reshape(latent_dim, njoints, self.ofs_pj),
             self.w_rot.reshape(latent_dim, njoints, self.rot_pj)],
            axis=2).reshape(latent_dim, njoints * fpj)
        b_main = jnp.concatenate(
            [self.b_ofs.reshape(1, njoints, self.ofs_pj),
             self.b_rot.reshape(1, njoints, self.rot_pj)],
            axis=2).reshape(1, njoints * fpj)
        w_cat = jnp.concatenate([w_main, self.w_mod], axis=1)
        b_cat = jnp.concatenate([b_main, self.b_mod], axis=1)

        self.n_main = njoints * fpj                          # concat(ofs,rot) slab
        self.n_total = self.n_main + input_feats_ofs         # + ofsModi slab
        n_pad = ((self.n_total + LANE - 1) // LANE) * LANE   # lane-dense matmul width
        w_cat = jnp.pad(w_cat, ((0, 0), (0, n_pad - self.n_total)))
        b_cat = jnp.pad(b_cat, ((0, 0), (0, n_pad - self.n_total)))

        self.w_fused = w_cat.astype(jnp.bfloat16) if use_bf16 else w_cat
        self.b_fused = b_cat  # bias stays f32 (added post f32 accumulation)

    def __call__(self, output):
        nframes, bs, latent = output.shape
        assert latent == self.latent_dim
        x2d = output.reshape(nframes * bs, latent)   # contiguous merge: free

        out_main, out_mod = fused_output_projection(
            x2d, self.w_fused, self.b_fused,
            nframes=nframes, bs=bs, n_main=self.n_main, n_total=self.n_total,
            compute_dtype=jnp.bfloat16 if self.use_bf16 else jnp.float32,
            out_dtype=output.dtype)

        fpj = self.ofs_pj + self.rot_pj
        # Kernel already produced (bs, features, nframes); these splits of the
        # feature dim are contiguous -> metadata-only reshapes (no HBM pass).
        out = out_main.reshape(bs, self.njoints, fpj, nframes)
        out_mod = out_mod.reshape(bs, self.njoints, self.ofs_pj, nframes)
        return out, out_mod


def _reference(output, mod: OutputProcessPallas):
    """Pure-JAX reference mirroring the PyTorch forward (un-fused weights)."""
    nframes, bs, _ = output.shape
    rot = output @ mod.w_rot + mod.b_rot[0]
    ofs = output @ mod.w_ofs + mod.b_ofs[0]
    mo = output @ mod.w_mod + mod.b_mod[0]
    rot = rot.reshape(nframes, bs, mod.njoints, -1)
    ofs = ofs.reshape(nframes, bs, mod.njoints, -1)
    mo = mo.reshape(nframes, bs, mod.njoints, -1)
    out = jnp.concatenate((ofs, rot), axis=3)
    return jnp.transpose(out, (1, 2, 3, 0)), jnp.transpose(mo, (1, 2, 3, 0))


if __name__ == "__main__":
    key = jax.random.PRNGKey(0)
    k_param, k_x, k_x2 = jax.random.split(key, 3)

    # small, self-consistent shapes: 4 joints, 6 rot feats / 3 ofs feats per joint
    nframes, bs, latent_dim, njoints = 8, 2, 32, 4
    input_feats_rot = njoints * 6   # 24
    input_feats_ofs = njoints * 3   # 12

    module = OutputProcessPallas(input_feats_rot, input_feats_ofs,
                                 latent_dim, njoints, k_param)

    # 1) f32 path, single frame tile.
    x = jax.random.normal(k_x, (nframes, bs, latent_dim), jnp.float32)
    out, out_mod = module(x)
    jax.block_until_ready((out, out_mod))
    ref_out, ref_mod = _reference(x, module)
    assert out.shape == (bs, njoints, 3 + 6, nframes), out.shape
    assert out_mod.shape == (bs, njoints, 3, nframes), out_mod.shape
    assert jnp.allclose(out, ref_out, atol=1e-5), "output mismatch"
    assert jnp.allclose(out_mod, ref_mod, atol=1e-5), "output_mod mismatch"

    # 2) Ragged / multi-tile check (per review): nframes not a multiple of the
    #    128-frame tile -> grid of 2 with a masked partial last block.
    nframes2 = 200
    x2 = jax.random.normal(k_x2, (nframes2, bs, latent_dim), jnp.float32)
    out2, out_mod2 = module(x2)
    jax.block_until_ready((out2, out_mod2))
    ref_out2, ref_mod2 = _reference(x2, module)
    assert jnp.allclose(out2, ref_out2, atol=1e-5), "ragged output mismatch"
    assert jnp.allclose(out_mod2, ref_mod2, atol=1e-5), "ragged output_mod mismatch"

    # 3) bf16 I/O path (in-kernel cast, f32 accumulation) -- looser tolerance.
    module_bf16 = OutputProcessPallas(input_feats_rot, input_feats_ofs,
                                      latent_dim, njoints, k_param, use_bf16=True)
    out3, out_mod3 = module_bf16(x)
    jax.block_until_ready((out3, out_mod3))
    assert jnp.allclose(out3, ref_out, atol=3e-2, rtol=3e-2), "bf16 output mismatch"
    assert jnp.allclose(out_mod3, ref_mod, atol=3e-2, rtol=3e-2), "bf16 output_mod mismatch"

    print("KERNEL_OK")
</pallas_src>

<mosaic_0001>
module attributes {stable_mosaic.version = 11 : i64} {
  func.func @_fused_output_kernel(%arg0: i32, %arg1: memref<16x32xf32, #tpu.memory_space<vmem>>, %arg2: memref<32x128xf32, #tpu.memory_space<vmem>>, %arg3: memref<1x128xf32, #tpu.memory_space<vmem>>, %arg4: memref<2x36x8xf32, #tpu.memory_space<vmem>>, %arg5: memref<2x12x8xf32, #tpu.memory_space<vmem>>, %arg6: memref<16x128xf32, #tpu.memory_space<vmem>>) attributes {dimension_semantics = [#tpu.dimension_semantics<parallel>], iteration_bounds = array<i64: 1>, scalar_prefetch = 0 : i64, scratch_operands = 1 : i64, tpu.core_type = #tpu.core_type<tc>, window_params = [{transform_indices = @transform_0, window_bounds = array<i64: 16, 32>}, {pipeline_mode = #tpu.pipeline_mode<synchronous>, transform_indices = @transform_1, window_bounds = array<i64: 32, 128>}, {pipeline_mode = #tpu.pipeline_mode<synchronous>, transform_indices = @transform_2, window_bounds = array<i64: 1, 128>}, {transform_indices = @transform_3, window_bounds = array<i64: 2, 36, 8>}, {transform_indices = @transform_4, window_bounds = array<i64: 2, 12, 8>}]} {
    %c0 = arith.constant 0 : index
    %c0_0 = arith.constant 0 : index
    %0 = vector.load %arg1[%c0, %c0_0] : memref<16x32xf32, #tpu.memory_space<vmem>>, vector<16x32xf32>
    %c0_1 = arith.constant 0 : index
    %c0_2 = arith.constant 0 : index
    %1 = vector.load %arg2[%c0_1, %c0_2] : memref<32x128xf32, #tpu.memory_space<vmem>>, vector<32x128xf32>
    %cst = arith.constant dense<0.000000e+00> : vector<16x128xf32>
    %2 = tpu.matmul %0, %1, %cst {dimension_numbers = #tpu.dot_dimension_numbers<[1], [0], [0], [1], [0, 0, 1, 1], [], []>} : vector<16x32xf32>, vector<32x128xf32>, vector<16x128xf32> -> vector<16x128xf32>
    %c0_3 = arith.constant 0 : index
    %c0_4 = arith.constant 0 : index
    %3 = vector.load %arg3[%c0_3, %c0_4] : memref<1x128xf32, #tpu.memory_space<vmem>>, vector<1x128xf32>
    %4 = vector.broadcast %3 : vector<1x128xf32> to vector<16x128xf32>
    %5 = arith.addf %2, %4 : vector<16x128xf32>
    %c0_5 = arith.constant 0 : index
    %c0_6 = arith.constant 0 : index
    %6 = vector.load %arg6[%c0_5, %c0_6] : memref<16x128xf32, #tpu.memory_space<vmem>>, vector<16x128xf32>
    tpu.vector_store %arg6[%c0_5, %c0_6], %5 {strides = array<i32>} : memref<16x128xf32, #tpu.memory_space<vmem>>, vector<16x128xf32>,
    %c0_7 = arith.constant 0 : index
    %c0_8 = arith.constant 0 : index
    %7 = tpu.strided_load %arg6[%c0_7, %c0_8] {strides = array<i32: 2, 1>} : memref<16x128xf32, #tpu.memory_space<vmem>>, vector<8x128xf32>
    %8 = tpu.transpose %7, [1, 0] : vector<8x128xf32> -> vector<128x8xf32>
    %9 = vector.extract_strided_slice %8 {offsets = [0, 0], sizes = [36, 8], strides = [1, 1]} : vector<128x8xf32> to vector<36x8xf32>
    %c0_9 = arith.constant 0 : index
    %c0_10 = arith.constant 0 : index
    %c0_11 = arith.constant 0 : index
    %10 = vector.load %arg4[%c0_9, %c0_10, %c0_11] : memref<2x36x8xf32, #tpu.memory_space<vmem>>, vector<1x36x8xf32>
    %11 = vector.shape_cast %10 : vector<1x36x8xf32> to vector<36x8xf32>
    %12 = vector.shape_cast %9 : vector<36x8xf32> to vector<1x36x8xf32>
    tpu.vector_store %arg4[%c0_9, %c0_10, %c0_11], %12 {strides = array<i32>} : memref<2x36x8xf32, #tpu.memory_space<vmem>>, vector<1x36x8xf32>,
    %13 = vector.extract_strided_slice %8 {offsets = [36, 0], sizes = [12, 8], strides = [1, 1]} : vector<128x8xf32> to vector<12x8xf32>
    %c0_12 = arith.constant 0 : index
    %c0_13 = arith.constant 0 : index
    %c0_14 = arith.constant 0 : index
    %14 = vector.load %arg5[%c0_12, %c0_13, %c0_14] : memref<2x12x8xf32, #tpu.memory_space<vmem>>, vector<1x12x8xf32>
    %15 = vector.shape_cast %14 : vector<1x12x8xf32> to vector<12x8xf32>
    %16 = vector.shape_cast %13 : vector<12x8xf32> to vector<1x12x8xf32>
    tpu.vector_store %arg5[%c0_12, %c0_13, %c0_14], %16 {strides = array<i32>} : memref<2x12x8xf32, #tpu.memory_space<vmem>>, vector<1x12x8xf32>,
    %c1 = arith.constant 1 : index
    %c0_15 = arith.constant 0 : index
    %17 = tpu.strided_load %arg6[%c1, %c0_15] {strides = array<i32: 2, 1>} : memref<16x128xf32, #tpu.memory_space<vmem>>, vector<8x128xf32>
    %18 = tpu.transpose %17, [1, 0] : vector<8x128xf32> -> vector<128x8xf32>
    %19 = vector.extract_strided_slice %18 {offsets = [0, 0], sizes = [36, 8], strides = [1, 1]} : vector<128x8xf32> to vector<36x8xf32>
    %c1_16 = arith.constant 1 : index
    %c0_17 = arith.constant 0 : index
    %c0_18 = arith.constant 0 : index
    %20 = vector.load %arg4[%c1_16, %c0_17, %c0_18] : memref<2x36x8xf32, #tpu.memory_space<vmem>>, vector<1x36x8xf32>
    %21 = vector.shape_cast %20 : vector<1x36x8xf32> to vector<36x8xf32>
    %22 = vector.shape_cast %19 : vector<36x8xf32> to vector<1x36x8xf32>
    tpu.vector_store %arg4[%c1_16, %c0_17, %c0_18], %22 {strides = array<i32>} : memref<2x36x8xf32, #tpu.memory_space<vmem>>, vector<1x36x8xf32>,
    %23 = vector.extract_strided_slice %18 {offsets = [36, 0], sizes = [12, 8], strides = [1, 1]} : vector<128x8xf32> to vector<12x8xf32>
    %c1_19 = arith.constant 1 : index
    %c0_20 = arith.constant 0 : index
    %c0_21 = arith.constant 0 : index
    %24 = vector.load %arg5[%c1_19, %c0_20, %c0_21] : memref<2x12x8xf32, #tpu.memory_space<vmem>>, vector<1x12x8xf32>
    %25 = vector.shape_cast %24 : vector<1x12x8xf32> to vector<12x8xf32>
    %26 = vector.shape_cast %23 : vector<12x8xf32> to vector<1x12x8xf32>
    tpu.vector_store %arg5[%c1_19, %c0_20, %c0_21], %26 {strides = array<i32>} : memref<2x12x8xf32, #tpu.memory_space<vmem>>, vector<1x12x8xf32>,
    return
  }
  func.func @transform_0(%arg0: i32) -> (i32, i32) {
    %c0_i32 = arith.constant 0 : i32
    %c0_i32_0 = arith.constant 0 : i32
    return %arg0, %c0_i32 : i32, i32
  }
  func.func @transform_1(%arg0: i32) -> (i32, i32) {
    %c0_i32 = arith.constant 0 : i32
    %c0_i32_0 = arith.constant 0 : i32
    %c0_i32_1 = arith.constant 0 : i32
    return %c0_i32, %c0_i32_0 : i32, i32
  }
  func.func @transform_2(%arg0: i32) -> (i32, i32) {
    %c0_i32 = arith.constant 0 : i32
    %c0_i32_0 = arith.constant 0 : i32
    %c0_i32_1 = arith.constant 0 : i32
    return %c0_i32, %c0_i32_0 : i32, i32
  }
  func.func @transform_3(%arg0: i32) -> (i32, i32, i32) {
    %c0_i32 = arith.constant 0 : i32
    %c0_i32_0 = arith.constant 0 : i32
    %c0_i32_1 = arith.constant 0 : i32
    return %c0_i32, %c0_i32_0, %arg0 : i32, i32, i32
  }
  func.func @transform_4(%arg0: i32) -> (i32, i32, i32) {
    %c0_i32 = arith.constant 0 : i32
    %c0_i32_0 = arith.constant 0 : i32
    %c0_i32_1 = arith.constant 0 : i32
    return %c0_i32, %c0_i32_0, %arg0 : i32, i32, i32
  }
}

</mosaic_0001>

<llo_original>
// kernel: tpu_custom_call.1
$region0: #{tpu_custom_call.1}
  #allocation0 [shape = 'u32[]', space=smem, size = 0x4, offset = 0x4, fixed_abs, tag = 'smem constant byte address 0x4 - core index']
  #allocation1 [shape = 'u32[144,128]{1,0:T(1,128)}', space=vmem, size = 0x12000, scoped, tag = 'internal scratch']
  #allocation2 [shape = 'f32[16,128]{1,0:T(8,128)}', space=vmem, size = 0x2000, scoped, tag = 'scratch operand']
  %s0 = inlined_call_operand.hbm [shape: f32[16,32], index: 0, kind: input, shape index: {}]
  %s1 = inlined_call_operand.hbm [shape: f32[32,128], index: 1, kind: input, shape index: {}]
  %s2 = inlined_call_operand.vmem [shape: f32[1,128], index: 2, kind: input, shape index: {}]
  %s3 = inlined_call_operand.vmem [shape: f32[2,36,8], index: 3, kind: output, shape index: {0}]
  %s4 = inlined_call_operand.vmem [shape: f32[2,12,8], index: 4, kind: output, shape index: {1}]
  %5 = xla_tuple %s3, %s4
  %s6 = sld [smem:[#allocation0]]
  $region38: #{tpu_custom_call.1} parent=0
    _
  %s8 = ssub.s32 1, %s6
  %s9 = scalar_select 0, %s8, %s6
  $region1: #{tpu_custom_call.1} parent=0
    #allocation3 [shape = 'u8[8192]{0}', space=vmem, size = 0x2000, scoped, tag = 'input window, operand 0, single buffered']
    #allocation4 [shape = 's32[1]{0}', space=sflag, size = 0x4, scoped, tag = 'scoped memory for tpu_custom_call.1']
    #allocation5 [shape = 'u8[16384]{0}', space=vmem, size = 0x4000, scoped, tag = 'input window, operand 1, single buffered']
    #allocation6 [shape = 's32[1]{0}', space=sflag, size = 0x4, scoped, tag = 'scoped memory for tpu_custom_call.1']
    %10 = vsyncpa [#allocation4], 0
    %11 = vsyncpa [#allocation6], 0
    // Predicated region
    $region2: #{tpu_custom_call.1} parent=1 // pred_check
      _
    $region3: #{tpu_custom_call.1} parent=1 // pred_check_branch
      %13 = sbr.rel (0) target = $region5
    $region4: #{tpu_custom_call.1} parent=1 // pred_region
      %s15 = ssub.s32 256, 256
      %16 = vsyncadd [#allocation4], %s15
      %s17 = sshll.u32 [#allocation3], 4
      %s18 = int_to_ptr.vmem [resolvable:$true] %s17
      %23 = dma.hbm_to_vmem [thread:$0]  %s0, 256, %s18, [#allocation4], 128, 128, 8
    $region5: #{tpu_custom_call.1} parent=1 // pred_fallthru
      _
    // Predicated region
    $region6: #{tpu_custom_call.1} parent=1 // pred_check
      _
    $region7: #{tpu_custom_call.1} parent=1 // pred_check_branch
      %25 = sbr.rel (0) target = $region9
    $region8: #{tpu_custom_call.1} parent=1 // pred_region
      %s27 = ssub.s32 512, 512
      %28 = vsyncadd [#allocation6], %s27
      %s29 = sshll.u32 [#allocation5], 4
      %s30 = int_to_ptr.vmem [resolvable:$true] %s29
      %35 = dma.hbm_to_vmem [thread:$0]  %s1, 512, %s30, [#allocation6], 128, 128, 8
    $region9: #{tpu_custom_call.1} parent=1 // pred_fallthru
      _
    // Predicated region
    $region10: #{tpu_custom_call.1} parent=1 // pred_check
      _
    $region11: #{tpu_custom_call.1} parent=1 // pred_check_branch
      %37 = sbr.rel (0) target = $region13
    $region12: #{tpu_custom_call.1} parent=1 // pred_region
      _
    $region13: #{tpu_custom_call.1} parent=1 // pred_fallthru
      _
    // Predicated region
    $region14: #{tpu_custom_call.1} parent=1 // pred_check
      _
    $region15: #{tpu_custom_call.1} parent=1 // pred_check_branch
      %39 = sbr.rel (0) target = $region17
    $region16: #{tpu_custom_call.1} parent=1 // pred_region
      %40 = dma.done [#allocation4], 256
    $region17: #{tpu_custom_call.1} parent=1 // pred_fallthru
      _
    // Predicated region
    $region18: #{tpu_custom_call.1} parent=1 // pred_check
      _
    $region19: #{tpu_custom_call.1} parent=1 // pred_check_branch
      %42 = sbr.rel (0) target = $region21
    $region20: #{tpu_custom_call.1} parent=1 // pred_region
      %43 = dma.done [#allocation6], 512
    $region21: #{tpu_custom_call.1} parent=1 // pred_fallthru
      _
    %v44 = vld [vmem:[#allocation3] sm:$0xff]
    %v45 = vld [vmem:[#allocation3 + $0x8] sm:$0xff]
    %v46 = vld [vmem:[#allocation5] sm:$0xff]
    %v47 = vld [vmem:[#allocation5 + $0x8] sm:$0xff]
    %v48 = vld [vmem:[#allocation5 + $0x10] sm:$0xff]
    %v49 = vld [vmem:[#allocation5 + $0x18] sm:$0xff]
    %v50 = vld [vmem:[%s2] sm:$0x1]
    %v52 = vlaneseq
    %v53 = vshrl.u32 %v52, 7
    %v54 = vsub.s32 0, %v53
    %v55 = vrot.slane %v50, %v54
    %vm57 = vcmask 261120
    %v59 = vsel %vm57, %v44, 0
    %v62 = vsel %vm57, %v45, 0
    %64 = vmatprep.subr.mxu0 0.0
    %65 = vmatpush1.msra.mxu0 %v46
    %66 = vmatprep.subr.mxu0 0.0
    %67 = vmatpush1.msra.mxu0 %v47
    %68 = vmatprep.subr.mxu0 0.0
    %69 = vmatpush1.msra.mxu0 %v48
    %70 = vmatprep.subr.mxu0 0.0
    %71 = vmatpush1.msra.mxu0 %v49
    %72 = vmatprep.subr.mxu0 0.0
    %73 = vmatpush1.msra.mxu0 0.0
    %74 = vmatprep.subr.mxu0 0.0
    %75 = vmatpush1.msra.mxu0 0.0
    %76 = vmatprep.subr.mxu0 0.0
    %77 = vmatpush1.msra.mxu0 0.0
    %78 = vmatprep.subr.mxu0 0.0
    %79 = vmatpush1.msra.mxu0 0.0
    %80 = vmatprep.subr.mxu0 0.0
    %81 = vmatpush1.msra.mxu0 0.0
    %82 = vmatprep.subr.mxu0 0.0
    %83 = vmatpush1.msra.mxu0 0.0
    %84 = vmatprep.subr.mxu0 0.0
    %85 = vmatpush1.msra.mxu0 0.0
    %86 = vmatprep.subr.mxu0 0.0
    %87 = vmatpush1.msra.mxu0 0.0
    %88 = vmatprep.subr.mxu0 0.0
    %89 = vmatpush1.msra.mxu0 0.0
    %90 = vmatprep.subr.mxu0 0.0
    %91 = vmatpush1.msra.mxu0 0.0
    %92 = vmatprep.subr.mxu0 0.0
    %93 = vmatpush1.msra.mxu0 0.0
    %94 = vmatprep.subr.mxu0 0.0
    %95 = vmatpush1.msra.mxu0 0.0
    %96 = vmatprep.subr.mxu0 0.0
    %97 = vmatpush1.msra.mxu0 0.0
    %98 = vmatprep.subr.mxu0 0.0
    %99 = vmatpush1.msra.mxu0 0.0
    %100 = vmatprep.subr.mxu0 0.0
    %101 = vmatpush1.msra.mxu0 0.0
    %102 = vmatprep.subr.mxu0 0.0
    %103 = vmatpush1.msra.mxu0 0.0
    %104 = vmatprep.subr.mxu0 0.0
    %105 = vmatpush1.msra.mxu0 0.0
    %106 = vmatprep.subr.mxu0 0.0
    %107 = vmatpush1.msra.mxu0 0.0
    %108 = vmatprep.subr.mxu0 0.0
    %109 = vmatpush1.msra.mxu0 0.0
    %110 = vmatprep.subr.mxu0 0.0
    %111 = vmatpush1.msra.mxu0 0.0
    %112 = vmatprep.subr.mxu0 0.0
    %113 = vmatpush1.msra.mxu0 0.0
    %114 = vmatprep.subr.mxu0 0.0
    %115 = vmatpush1.msra.mxu0 0.0
    %116 = vmatprep.subr.mxu0 0.0
    %117 = vmatpush1.msra.mxu0 0.0
    %118 = vmatprep.subr.mxu0 0.0
    %119 = vmatpush1.msra.mxu0 0.0
    %120 = vmatprep.subr.mxu0 0.0
    %121 = vmatpush1.msra.mxu0 0.0
    %122 = vmatprep.subr.mxu0 0.0
    %123 = vmatpush1.msra.mxu0 0.0
    %124 = vmatprep.subr.mxu0 0.0
    %125 = vmatpush1.msra.mxu0 0.0
    %126 = vmatprep.subr.mxu0 0.0
    %127 = vmatpush1.msra.mxu0 0.0
    %128 = vmatprep.mubr.f32.mxu0 0.0
    %129 = vmatmul.mubr.f32.gmra.mrb[0].mxu0 %v59
    %v130 = vpop.f32.mrb[0].mxu0
    %v131 = vadd.f32 %v55, %v130
    %v132 = vpop.f32.mrb[0].mxu0
    %133 = vmatprep.mubr.f32.mxu0 0.0
    %134 = vmatmul.mubr.f32.gmra.mrb[0].mxu0 %v62
    %v135 = vpop.f32.mrb[0].mxu0
    %v136 = vadd.f32 %v55, %v135
    %v137 = vpop.f32.mrb[0].mxu0
    %138 = vdwg.mxu0
    %139 = vst [vmem:[#allocation2] sm:$0xff] %v131
    %140 = vst [vmem:[#allocation2 + $0x8] sm:$0xff] %v136
    %v141 = vld [vmem:[#allocation2] ss:$2 sm:$0xff]
    %142 = vxpose.xlu0.b32.start [1/16] %v141, 128
    %143 = vxpose.xlu0.b32.cont [2/16] 0.0, 128
    %144 = vxpose.xlu0.b32.cont [3/16] 0.0, 128
    %145 = vxpose.xlu0.b32.cont [4/16] 0.0, 128
    %146 = vxpose.xlu0.b32.cont [5/16] 0.0, 128
    %147 = vxpose.xlu0.b32.cont [6/16] 0.0, 128
    %148 = vxpose.xlu0.b32.cont [7/16] 0.0, 128
    %149 = vxpose.xlu0.b32.cont [8/16] 0.0, 128
    %150 = vxpose.xlu0.b32.cont [9/16] 0.0, 128
    %151 = vxpose.xlu0.b32.cont [10/16] 0.0, 128
    %152 = vxpose.xlu0.b32.cont [11/16] 0.0, 128
    %153 = vxpose.xlu0.b32.cont [12/16] 0.0, 128
    %154 = vxpose.xlu0.b32.cont [13/16] 0.0, 128
    %155 = vxpose.xlu0.b32.cont [14/16] 0.0, 128
    %156 = vxpose.xlu0.b32.cont [15/16] 0.0, 128
    %157 = vxpose.xlu0.b32.end [16/16] 0.0, 128
    %v158 = vpop.trf.xlu0
    %v159 = vpop.trf.xlu0
    %v160 = vpop.trf.xlu0
    %v161 = vpop.trf.xlu0
    %v162 = vpop.trf.xlu0
    %v163 = vpop.trf.xlu0
    %v164 = vpop.trf.xlu0
    %v165 = vpop.trf.xlu0
    %v166 = vpop.trf.xlu0
    %v167 = vpop.trf.xlu0
    %v168 = vpop.trf.xlu0
    %v169 = vpop.trf.xlu0
    %v170 = vpop.trf.xlu0
    %v171 = vpop.trf.xlu0
    %v172 = vpop.trf.xlu0
    %v173 = vpop.trf.xlu0
    %vm174 = vcmask 64512
    %175 = vst.msk [vmem:[%s3] sm:$0xff] %vm174, %v158
    %176 = vst.msk [vmem:[%s3 + $0x8] sm:$0xff] %vm174, %v159
    %177 = vst.msk [vmem:[%s3 + $0x10] sm:$0xff] %vm174, %v160
    %178 = vst.msk [vmem:[%s3 + $0x18] sm:$0xff] %vm174, %v161
    %vm179 = vcmask 60416
    %180 = vst.msk [vmem:[%s3 + $0x20] sm:$0xf] %vm179, %v162
    %vm181 = vcmask 64516
    %182 = vst.msk [vmem:[%s4 - $0x4] sm:$0xf0] %vm181, %v162
    %183 = vst.msk [vmem:[%s4 + $0x4] sm:$0xff] %vm174, %v163
    %s184 = scalar_lea.vmem [#allocation2], 1
    %v185 = vld [vmem:[%s184] ss:$2 sm:$0xff]
    %186 = vxpose.xlu0.b32.start [1/16] %v185, 128
    %187 = vxpose.xlu0.b32.cont [2/16] 0.0, 128
    %188 = vxpose.xlu0.b32.cont [3/16] 0.0, 128
    %189 = vxpose.xlu0.b32.cont [4/16] 0.0, 128
    %190 = vxpose.xlu0.b32.cont [5/16] 0.0, 128
    %191 = vxpose.xlu0.b32.cont [6/16] 0.0, 128
    %192 = vxpose.xlu0.b32.cont [7/16] 0.0, 128
    %193 = vxpose.xlu0.b32.cont [8/16] 0.0, 128
    %194 = vxpose.xlu0.b32.cont [9/16] 0.0, 128
    %195 = vxpose.xlu0.b32.cont [10/16] 0.0, 128
    %196 = vxpose.xlu0.b32.cont [11/16] 0.0, 128
    %197 = vxpose.xlu0.b32.cont [12/16] 0.0, 128
    %198 = vxpose.xlu0.b32.cont [13/16] 0.0, 128
    %199 = vxpose.xlu0.b32.cont [14/16] 0.0, 128
    %200 = vxpose.xlu0.b32.cont [15/16] 0.0, 128
    %201 = vxpose.xlu0.b32.end [16/16] 0.0, 128
    %v202 = vpop.trf.xlu0
    %v203 = vpop.trf.xlu0
    %v204 = vpop.trf.xlu0
    %v205 = vpop.trf.xlu0
    %v206 = vpop.trf.xlu0
    %v207 = vpop.trf.xlu0
    %v208 = vpop.trf.xlu0
    %v209 = vpop.trf.xlu0
    %v210 = vpop.trf.xlu0
    %v211 = vpop.trf.xlu0
    %v212 = vpop.trf.xlu0
    %v213 = vpop.trf.xlu0
    %v214 = vpop.trf.xlu0
    %v215 = vpop.trf.xlu0
    %v216 = vpop.trf.xlu0
    %v217 = vpop.trf.xlu0
    %s218 = scalar_lea.vmem %s3, 40
    %219 = vst.msk [vmem:[%s218] sm:$0xff] %vm174, %v202
    %220 = vst.msk [vmem:[%s218 + $0x8] sm:$0xff] %vm174, %v203
    %221 = vst.msk [vmem:[%s218 + $0x10] sm:$0xff] %vm174, %v204
    %222 = vst.msk [vmem:[%s218 + $0x18] sm:$0xff] %vm174, %v205
    %223 = vst.msk [vmem:[%s218 + $0x20] sm:$0xf] %vm179, %v206
    %s224 = scalar_lea.vmem %s4, 16
    %225 = vst.msk [vmem:[%s224 - $0x4] sm:$0xf0] %vm181, %v206
    %226 = vst.msk [vmem:[%s224 + $0x4] sm:$0xff] %vm174, %v207
    // Predicated region
    $region22: #{tpu_custom_call.1} parent=1 // pred_check
      _
    $region23: #{tpu_custom_call.1} parent=1 // pred_check_branch
      %228 = sbr.rel (0) target = $region25
    $region24: #{tpu_custom_call.1} parent=1 // pred_region
      _
    $region25: #{tpu_custom_call.1} parent=1 // pred_fallthru
      _
    // Predicated region
    $region26: #{tpu_custom_call.1} parent=1 // pred_check
      _
    $region27: #{tpu_custom_call.1} parent=1 // pred_check_branch
      %230 = sbr.rel (0) target = $region29
    $region28: #{tpu_custom_call.1} parent=1 // pred_region
      _
    $region29: #{tpu_custom_call.1} parent=1 // pred_fallthru
      _
    // Predicated region
    $region30: #{tpu_custom_call.1} parent=1 // pred_check
      _
    $region31: #{tpu_custom_call.1} parent=1 // pred_check_branch
      %232 = sbr.rel (0) target = $region33
    $region32: #{tpu_custom_call.1} parent=1 // pred_region
      _
    $region33: #{tpu_custom_call.1} parent=1 // pred_fallthru
      _
    // Predicated region
    $region34: #{tpu_custom_call.1} parent=1 // pred_check
      _
    $region35: #{tpu_custom_call.1} parent=1 // pred_check_branch
      %234 = sbr.rel (0) target = $region37
    $region36: #{tpu_custom_call.1} parent=1 // pred_region
      _
    $region37: #{tpu_custom_call.1} parent=1 // pred_fallthru
      _
    %235 = vsyncpa [#allocation4], 1
    %236 = vsyncpa [#allocation6], 1

</llo_original>
